<compile_context>
chip_gen: v7x
topology: tpu7x:2x2x1
jax: 0.10.0
libtpu: 0.0.40
codegen_flags: <defaults>
</compile_context>

<pallas_src>
import functools

import numpy as np

import jax
import jax.numpy as jnp
from jax.experimental import pallas as pl
from jax.experimental.pallas import tpu as pltpu


# ---------------------------------------------------------------------------
# Pallas kernel: full forward, per-batch DFT matmuls, fused spectral conv.
# ---------------------------------------------------------------------------
def _spectral_transformer_kernel(
    x_ref, w1_ref, g1_ref, b1_ref, ar_ref, ai_ref, wf_ref,
    gf_ref, bf_ref, cri_ref, w2_ref, out_ref, xri_scr,
    *, nb, seq, lf, lfp, cmid,
):
    f32 = jnp.float32
    bf16 = jnp.bfloat16
    eps = 1e-5
    n1 = float(nb * seq)      # BN1 population: all batches x all positions
    n2 = float(nb * lf)       # BN2 population: all batches x real frequencies

    w1 = w1_ref[...]          # (Cmid, Cin) bf16

    # ---- conv1 (1x1 conv == per-batch channel matmul) + BN1 mean -----------
    ys = []
    s1 = jnp.zeros((cmid, 1), f32)
    for b in range(nb):
        xb = x_ref[b].astype(bf16)                               # (Cin, L)
        yb = jnp.dot(w1, xb, preferred_element_type=f32)         # (Cmid, L) f32
        ys.append(yb)
        s1 = s1 + jnp.sum(yb, axis=1, keepdims=True)
    m1 = s1 * (1.0 / n1)

    # Centered two-pass variance (avoids E[x^2]-E[x]^2 cancellation).
    c1 = jnp.zeros((cmid, 1), f32)
    for b in range(nb):
        d = ys[b] - m1
        c1 = c1 + jnp.sum(d * d, axis=1, keepdims=True)
    v1 = c1 * (1.0 / n1)
    sc1 = g1_ref[...] * jax.lax.rsqrt(v1 + eps)
    sh1 = b1_ref[...] - m1 * sc1

    # ---- BN1 + ReLU, then per-batch rfft (ortho) into the stacked scratch --
    # xri_scr rows [0:Cmid] = Re spectrum, rows [Cmid:2Cmid] = Im spectrum;
    # per-batch column blocks of width Lfp are 128-aligned (Lfp % 128 == 0).
    ar = ar_ref[...]                                             # (L, Lfp) bf16
    ai = ai_ref[...]
    hbs = []                                                     # bf16 only kept live
    for b in range(nb):
        hb = jnp.maximum(ys[b] * sc1 + sh1, 0.0).astype(bf16)    # (Cmid, L)
        hbs.append(hb)
        c0 = b * lfp
        xri_scr[0:cmid, c0:c0 + lfp] = jnp.dot(
            hb, ar, preferred_element_type=f32)
        xri_scr[cmid:2 * cmid, c0:c0 + lfp] = jnp.dot(
            hb, ai, preferred_element_type=f32)

    # ---- fused spectral 1x1 conv over all batches: K=2*Cmid, N=B*Lfp -------
    z = jnp.dot(wf_ref[...], xri_scr[...].astype(bf16),
                preferred_element_type=f32)                      # (2Cmid, B*Lfp)

    # Spectral BatchNorm + ReLU.  Padded spectral columns of z are exact
    # zeros, so sums over the padded width equal sums over the Lf real
    # frequencies; divide by the true count and subtract the (0 - m)^2
    # contribution of the padded columns from the centered sum.
    m2 = jnp.sum(z, axis=1, keepdims=True) * (1.0 / n2)
    d2 = z - m2
    npad = float(nb * (lfp - lf))
    v2 = (jnp.sum(d2 * d2, axis=1, keepdims=True) - npad * m2 * m2) * (1.0 / n2)
    sc2 = gf_ref[...] * jax.lax.rsqrt(v2 + eps)
    sh2 = bf_ref[...] - m2 * sc2
    y = jnp.maximum(z * sc2 + sh2, 0.0).astype(bf16)             # (2Cmid, B*Lfp)

    # ---- per-batch irfft (single K=2*Lfp matmul), residual add, conv2 ------
    # Zero rows of cri at the padded frequencies kill the post-BN values of
    # the padded columns, so no masking is needed.
    cri = cri_ref[...]                                           # (2*Lfp, L) bf16
    w2 = w2_ref[...]                                             # (Cout, Cmid) bf16
    for b in range(nb):
        c0 = b * lfp
        ycat = jnp.concatenate(
            [y[:cmid, c0:c0 + lfp], y[cmid:, c0:c0 + lfp]], axis=1)  # (Cmid, 2Lfp)
        fu = jnp.dot(ycat, cri, preferred_element_type=f32)          # (Cmid, L)
        resid = (fu + hbs[b].astype(f32)).astype(bf16)
        out_ref[b] = jnp.dot(w2, resid, preferred_element_type=f32)  # (Cout, L)


# ---------------------------------------------------------------------------
# Cached per-length DFT matrices (independent of batch size), Lf padded to 128.
# ---------------------------------------------------------------------------
@functools.lru_cache(maxsize=16)
def _dft_matrices(L, Lfp):
    Lf = L // 2 + 1
    n = np.arange(L, dtype=np.float64)[:, None]            # (L, 1)
    k = np.arange(Lf, dtype=np.float64)[None, :]            # (1, Lf)
    ang = 2.0 * np.pi * n * k / L
    s = 1.0 / np.sqrt(L)
    ar = np.zeros((L, Lfp), np.float64)
    ai = np.zeros((L, Lfp), np.float64)
    ar[:, :Lf] = np.cos(ang) * s
    ai[:, :Lf] = -np.sin(ang) * s
    # irfft of a onesided Hermitian spectrum: DC / Nyquist get weight 1, rest 2.
    idx = np.arange(Lf)
    special = idx == 0
    if L % 2 == 0:
        special = special | (idx == L // 2)
    wk = np.where(special, 1.0, 2.0)[:, None]                # (Lf, 1)
    ang2 = 2.0 * np.pi * k.T * n.T / L                       # (Lf, L)
    cr = np.zeros((Lfp, L), np.float64)
    ci = np.zeros((Lfp, L), np.float64)
    cr[:Lf, :] = wk * np.cos(ang2) * s
    ci[:Lf, :] = -wk * np.sin(ang2) * s
    cri = np.concatenate([cr, ci], axis=0)                   # (2*Lfp, L)
    bf16 = jnp.bfloat16
    return (jnp.asarray(ar, bf16), jnp.asarray(ai, bf16), jnp.asarray(cri, bf16))


def _vmem_limit_bytes():
    """Generation-aware VMEM limit: ~85% of physical (64 MiB v7x, 128 MiB v5e/v6e)."""
    cap = 64 * 1024 * 1024                      # safe fallback for any generation
    try:
        info_fn = getattr(pltpu, "get_tpu_info", None)
        if info_fn is not None:
            cap = int(getattr(info_fn(), "vmem_capacity_bytes", cap))
    except Exception:
        pass
    return int(cap * 0.85)


# ---------------------------------------------------------------------------
# Wrapper: parameter plumbing (block-form spectral weights, DFT matrices).
# ---------------------------------------------------------------------------
def spectral_transformer(x, params):
    """x: (B, Cin, L) float32, NCL layout (same as PyTorch Conv1d)."""
    f32 = jnp.float32
    bf16 = jnp.bfloat16
    B, Cin, L = x.shape
    w1 = params["w1"]                       # (Cmid, Cin)
    wf = params["wf"]                       # (2*Cmid, 2*Cmid), interleaved re/im
    w2 = params["w2"]                       # (Cout, Cmid)
    Cmid = w1.shape[0]
    Cout = w2.shape[0]
    Lf = L // 2 + 1
    Lfp = ((Lf + 127) // 128) * 128         # lane-dense, 128-aligned spectra

    # Spectral conv weight: interleaved -> [[wrr, wri], [wir, wii]] block form
    # acting on the row-stacked [Re; Im] spectrum (no in-kernel interleaving).
    wrr = wf[0::2, 0::2]
    wri = wf[0::2, 1::2]
    wir = wf[1::2, 0::2]
    wii = wf[1::2, 1::2]
    wfull = jnp.concatenate(
        [jnp.concatenate([wrr, wri], axis=1),
         jnp.concatenate([wir, wii], axis=1)], axis=0).astype(bf16)  # (2Cmid, 2Cmid)

    g1 = params["g1"].astype(f32).reshape(Cmid, 1)
    b1 = params["b1"].astype(f32).reshape(Cmid, 1)
    gfp = params["gf"].astype(f32)
    bfp = params["bf"].astype(f32)
    gf2 = jnp.concatenate([gfp[0::2], gfp[1::2]]).reshape(2 * Cmid, 1)
    bf2 = jnp.concatenate([bfp[0::2], bfp[1::2]]).reshape(2 * Cmid, 1)

    ar, ai, cri = _dft_matrices(L, Lfp)

    kernel = functools.partial(
        _spectral_transformer_kernel,
        nb=B, seq=L, lf=Lf, lfp=Lfp, cmid=Cmid)

    flops = int(2 * Cmid * Cin * B * L                       # conv1
                + 4 * Cmid * L * Lfp * B                     # rfft (re + im)
                + 2 * (2 * Cmid) * (2 * Cmid) * B * Lfp      # spectral conv
                + 2 * Cmid * (2 * Lfp) * L * B               # irfft
                + 2 * Cout * Cmid * B * L)                   # conv2
    bytes_accessed = int(4 * B * Cin * L + 4 * B * Cout * L
                         + 2 * (Cmid * Cin + 4 * Cmid * Cmid + Cout * Cmid)
                         + 2 * (2 * L * Lfp + 2 * Lfp * L)
                         + 4 * 6 * Cmid)
    cost = pl.CostEstimate(flops=flops, transcendentals=int(3 * Cmid),
                           bytes_accessed=bytes_accessed)

    vmem = pl.BlockSpec(memory_space=pltpu.MemorySpace.VMEM)
    out = pl.pallas_call(
        kernel,
        out_shape=jax.ShapeDtypeStruct((B, Cout, L), f32),
        in_specs=[vmem] * 11,
        out_specs=vmem,
        scratch_shapes=[pltpu.VMEM((2 * Cmid, B * Lfp), f32)],
        compiler_params=pltpu.CompilerParams(
            vmem_limit_bytes=_vmem_limit_bytes()),
        cost_estimate=cost,
    )(x, w1.astype(bf16), g1, b1, ar, ai, wfull, gf2, bf2, cri, w2.astype(bf16))
    return out


# ---------------------------------------------------------------------------
# Pure-JAX reference (mirrors the PyTorch forward semantics, f32 throughout).
# ---------------------------------------------------------------------------
def reference_forward(x, params):
    eps = 1e-5
    hp = jax.lax.Precision.HIGHEST
    w1, g1, b1 = params["w1"], params["g1"], params["b1"]
    wf, gf, bf = params["wf"], params["gf"], params["bf"]
    w2 = params["w2"]
    B, _, L = x.shape
    Cmid = w1.shape[0]

    y1 = jnp.einsum("oc,bcl->bol", w1, x, precision=hp)
    m = y1.mean(axis=(0, 2), keepdims=True)
    v = ((y1 - m) ** 2).mean(axis=(0, 2), keepdims=True)
    h = jnp.maximum(
        g1.reshape(1, -1, 1) * (y1 - m) / jnp.sqrt(v + eps) + b1.reshape(1, -1, 1), 0.0)

    ff = jnp.fft.rfft(h, axis=-1, norm="ortho")
    Lf = ff.shape[-1]
    ffted = jnp.stack([jnp.real(ff), jnp.imag(ff)], axis=2).reshape(B, 2 * Cmid, Lf)
    z = jnp.einsum("oc,bcl->bol", wf, ffted, precision=hp)
    m2 = z.mean(axis=(0, 2), keepdims=True)
    v2 = ((z - m2) ** 2).mean(axis=(0, 2), keepdims=True)
    z = jnp.maximum(
        gf.reshape(1, -1, 1) * (z - m2) / jnp.sqrt(v2 + eps) + bf.reshape(1, -1, 1), 0.0)
    zc = z.reshape(B, Cmid, 2, Lf)
    spec = zc[:, :, 0, :] + 1j * zc[:, :, 1, :]
    full = jnp.concatenate([spec, jnp.conj(spec[..., 1:-1])[..., ::-1]], axis=-1)
    fu = jnp.real(jnp.fft.ifft(full, axis=-1, norm="ortho"))

    return jnp.einsum("oc,bcl->bol", w2, h + fu, precision=hp)


if __name__ == "__main__":
    B, Cin, Cout, L = 2, 4, 8, 16          # stride=1, groups=1 defaults
    Cmid = Cout // 2

    key = jax.random.PRNGKey(0)
    kx, kw1, kwf, kw2, kg1, kb1, kgf, kbf = jax.random.split(key, 8)
    x = jax.random.normal(kx, (B, Cin, L), jnp.float32)
    params = dict(
        w1=0.3 * jax.random.normal(kw1, (Cmid, Cin), jnp.float32),
        wf=0.3 * jax.random.normal(kwf, (2 * Cmid, 2 * Cmid), jnp.float32),
        w2=0.3 * jax.random.normal(kw2, (Cout, Cmid), jnp.float32),
        g1=1.0 + 0.1 * jax.random.normal(kg1, (Cmid,), jnp.float32),
        b1=0.1 * jax.random.normal(kb1, (Cmid,), jnp.float32),
        gf=1.0 + 0.1 * jax.random.normal(kgf, (2 * Cmid,), jnp.float32),
        bf=0.1 * jax.random.normal(kbf, (2 * Cmid,), jnp.float32),
    )

    out = spectral_transformer(x, params)
    out = jax.block_until_ready(out)
    assert out.shape == (B, Cout, L), out.shape

    ref = reference_forward(x, params)
    # Matmul operands are bf16 (f32 accumulation), so tolerance is loosened
    # slightly relative to the all-f32 reference.
    if not jnp.allclose(out, ref, atol=5e-2, rtol=5e-2):
        raise AssertionError(
            f"kernel/reference mismatch, max abs diff = {jnp.max(jnp.abs(out - ref))}")

    print("KERNEL_OK")
</pallas_src>

<mosaic_0001>
module attributes {stable_mosaic.version = 11 : i64} {
  func.func @_spectral_transformer_kernel(%arg0: memref<2x4x16xf32, #tpu.memory_space<vmem>>, %arg1: memref<4x4xbf16, #tpu.memory_space<vmem>>, %arg2: memref<4x1xf32, #tpu.memory_space<vmem>>, %arg3: memref<4x1xf32, #tpu.memory_space<vmem>>, %arg4: memref<16x128xbf16, #tpu.memory_space<vmem>>, %arg5: memref<16x128xbf16, #tpu.memory_space<vmem>>, %arg6: memref<8x8xbf16, #tpu.memory_space<vmem>>, %arg7: memref<8x1xf32, #tpu.memory_space<vmem>>, %arg8: memref<8x1xf32, #tpu.memory_space<vmem>>, %arg9: memref<256x16xbf16, #tpu.memory_space<vmem>>, %arg10: memref<8x4xbf16, #tpu.memory_space<vmem>>, %arg11: memref<2x8x16xf32, #tpu.memory_space<vmem>>, %arg12: memref<8x256xf32, #tpu.memory_space<vmem>>) attributes {dimension_semantics = [], scalar_prefetch = 0 : i64, scratch_operands = 1 : i64, tpu.core_type = #tpu.core_type<tc>} {
    %c0 = arith.constant 0 : index
    %c0_0 = arith.constant 0 : index
    %0 = vector.load %arg1[%c0, %c0_0] : memref<4x4xbf16, #tpu.memory_space<vmem>>, vector<4x4xbf16>
    %cst = arith.constant 0.000000e+00 : f32
    %1 = vector.broadcast %cst : f32 to vector<4x1xf32>
    %c0_1 = arith.constant 0 : index
    %c0_2 = arith.constant 0 : index
    %c0_3 = arith.constant 0 : index
    %2 = vector.load %arg0[%c0_1, %c0_2, %c0_3] : memref<2x4x16xf32, #tpu.memory_space<vmem>>, vector<1x4x16xf32>
    %3 = vector.shape_cast %2 : vector<1x4x16xf32> to vector<4x16xf32>
    %4 = arith.truncf %3 : vector<4x16xf32> to vector<4x16xbf16>
    %cst_4 = arith.constant dense<0.000000e+00> : vector<4x16xf32>
    %5 = tpu.matmul %0, %4, %cst_4 {dimension_numbers = #tpu.dot_dimension_numbers<[1], [0], [0], [1], [0, 0, 1, 1], [], []>} : vector<4x4xbf16>, vector<4x16xbf16>, vector<4x16xf32> -> vector<4x16xf32>
    %cst_5 = arith.constant dense<0.000000e+00> : vector<4xf32>
    %6 = vector.multi_reduction <add>, %5, %cst_5 [1] : vector<4x16xf32> to vector<4xf32>
    %7 = vector.shape_cast %6 : vector<4xf32> to vector<4x1xf32>
    %8 = arith.addf %1, %7 : vector<4x1xf32>
    %c1 = arith.constant 1 : index
    %c0_6 = arith.constant 0 : index
    %c0_7 = arith.constant 0 : index
    %9 = vector.load %arg0[%c1, %c0_6, %c0_7] : memref<2x4x16xf32, #tpu.memory_space<vmem>>, vector<1x4x16xf32>
    %10 = vector.shape_cast %9 : vector<1x4x16xf32> to vector<4x16xf32>
    %11 = arith.truncf %10 : vector<4x16xf32> to vector<4x16xbf16>
    %cst_8 = arith.constant dense<0.000000e+00> : vector<4x16xf32>
    %12 = tpu.matmul %0, %11, %cst_8 {dimension_numbers = #tpu.dot_dimension_numbers<[1], [0], [0], [1], [0, 0, 1, 1], [], []>} : vector<4x4xbf16>, vector<4x16xbf16>, vector<4x16xf32> -> vector<4x16xf32>
    %cst_9 = arith.constant dense<0.000000e+00> : vector<4xf32>
    %13 = vector.multi_reduction <add>, %12, %cst_9 [1] : vector<4x16xf32> to vector<4xf32>
    %14 = vector.shape_cast %13 : vector<4xf32> to vector<4x1xf32>
    %15 = arith.addf %8, %14 : vector<4x1xf32>
    %cst_10 = arith.constant 3.125000e-02 : f32
    %16 = vector.broadcast %cst_10 : f32 to vector<4x1xf32>
    %17 = arith.mulf %15, %16 : vector<4x1xf32>
    %cst_11 = arith.constant 0.000000e+00 : f32
    %18 = vector.broadcast %cst_11 : f32 to vector<4x1xf32>
    %19 = vector.broadcast %17 : vector<4x1xf32> to vector<4x16xf32>
    %20 = arith.subf %5, %19 : vector<4x16xf32>
    %21 = arith.mulf %20, %20 : vector<4x16xf32>
    %cst_12 = arith.constant dense<0.000000e+00> : vector<4xf32>
    %22 = vector.multi_reduction <add>, %21, %cst_12 [1] : vector<4x16xf32> to vector<4xf32>
    %23 = vector.shape_cast %22 : vector<4xf32> to vector<4x1xf32>
    %24 = arith.addf %18, %23 : vector<4x1xf32>
    %25 = vector.broadcast %17 : vector<4x1xf32> to vector<4x16xf32>
    %26 = arith.subf %12, %25 : vector<4x16xf32>
    %27 = arith.mulf %26, %26 : vector<4x16xf32>
    %cst_13 = arith.constant dense<0.000000e+00> : vector<4xf32>
    %28 = vector.multi_reduction <add>, %27, %cst_13 [1] : vector<4x16xf32> to vector<4xf32>
    %29 = vector.shape_cast %28 : vector<4xf32> to vector<4x1xf32>
    %30 = arith.addf %24, %29 : vector<4x1xf32>
    %cst_14 = arith.constant 3.125000e-02 : f32
    %31 = vector.broadcast %cst_14 : f32 to vector<4x1xf32>
    %32 = arith.mulf %30, %31 : vector<4x1xf32>
    %c0_15 = arith.constant 0 : index
    %c0_16 = arith.constant 0 : index
    %33 = vector.load %arg2[%c0_15, %c0_16] : memref<4x1xf32, #tpu.memory_space<vmem>>, vector<4x1xf32>
    %cst_17 = arith.constant 9.99999974E-6 : f32
    %34 = vector.broadcast %cst_17 : f32 to vector<4x1xf32>
    %35 = arith.addf %32, %34 : vector<4x1xf32>
    %36 = math.rsqrt %35 : vector<4x1xf32>
    %37 = arith.mulf %33, %36 : vector<4x1xf32>
    %c0_18 = arith.constant 0 : index
    %c0_19 = arith.constant 0 : index
    %38 = vector.load %arg3[%c0_18, %c0_19] : memref<4x1xf32, #tpu.memory_space<vmem>>, vector<4x1xf32>
    %39 = arith.mulf %17, %37 : vector<4x1xf32>
    %40 = arith.subf %38, %39 : vector<4x1xf32>
    %c0_20 = arith.constant 0 : index
    %c0_21 = arith.constant 0 : index
    %41 = vector.load %arg4[%c0_20, %c0_21] : memref<16x128xbf16, #tpu.memory_space<vmem>>, vector<16x128xbf16>
    %c0_22 = arith.constant 0 : index
    %c0_23 = arith.constant 0 : index
    %42 = vector.load %arg5[%c0_22, %c0_23] : memref<16x128xbf16, #tpu.memory_space<vmem>>, vector<16x128xbf16>
    %43 = vector.broadcast %37 : vector<4x1xf32> to vector<4x16xf32>
    %44 = arith.mulf %5, %43 : vector<4x16xf32>
    %45 = vector.broadcast %40 : vector<4x1xf32> to vector<4x16xf32>
    %46 = arith.addf %44, %45 : vector<4x16xf32>
    %cst_24 = arith.constant 0.000000e+00 : f32
    %47 = vector.broadcast %cst_24 : f32 to vector<4x16xf32>
    %48 = arith.maximumf %46, %47 : vector<4x16xf32>
    %49 = arith.truncf %48 : vector<4x16xf32> to vector<4x16xbf16>
    %cst_25 = arith.constant dense<0.000000e+00> : vector<4x128xf32>
    %50 = tpu.matmul %49, %41, %cst_25 {dimension_numbers = #tpu.dot_dimension_numbers<[1], [0], [0], [1], [0, 0, 1, 1], [], []>} : vector<4x16xbf16>, vector<16x128xbf16>, vector<4x128xf32> -> vector<4x128xf32>
    %c0_26 = arith.constant 0 : index
    %c0_27 = arith.constant 0 : index
    %51 = vector.load %arg12[%c0_26, %c0_27] : memref<8x256xf32, #tpu.memory_space<vmem>>, vector<4x128xf32>
    tpu.vector_store %arg12[%c0_26, %c0_27], %50 {strides = array<i32>} : memref<8x256xf32, #tpu.memory_space<vmem>>, vector<4x128xf32>,
    %cst_28 = arith.constant dense<0.000000e+00> : vector<4x128xf32>
    %52 = tpu.matmul %49, %42, %cst_28 {dimension_numbers = #tpu.dot_dimension_numbers<[1], [0], [0], [1], [0, 0, 1, 1], [], []>} : vector<4x16xbf16>, vector<16x128xbf16>, vector<4x128xf32> -> vector<4x128xf32>
    %c4 = arith.constant 4 : index
    %c0_29 = arith.constant 0 : index
    %53 = vector.load %arg12[%c4, %c0_29] : memref<8x256xf32, #tpu.memory_space<vmem>>, vector<4x128xf32>
    tpu.vector_store %arg12[%c4, %c0_29], %52 {strides = array<i32>} : memref<8x256xf32, #tpu.memory_space<vmem>>, vector<4x128xf32>,
    %54 = vector.broadcast %37 : vector<4x1xf32> to vector<4x16xf32>
    %55 = arith.mulf %12, %54 : vector<4x16xf32>
    %56 = vector.broadcast %40 : vector<4x1xf32> to vector<4x16xf32>
    %57 = arith.addf %55, %56 : vector<4x16xf32>
    %cst_30 = arith.constant 0.000000e+00 : f32
    %58 = vector.broadcast %cst_30 : f32 to vector<4x16xf32>
    %59 = arith.maximumf %57, %58 : vector<4x16xf32>
    %60 = arith.truncf %59 : vector<4x16xf32> to vector<4x16xbf16>
    %cst_31 = arith.constant dense<0.000000e+00> : vector<4x128xf32>
    %61 = tpu.matmul %60, %41, %cst_31 {dimension_numbers = #tpu.dot_dimension_numbers<[1], [0], [0], [1], [0, 0, 1, 1], [], []>} : vector<4x16xbf16>, vector<16x128xbf16>, vector<4x128xf32> -> vector<4x128xf32>
    %c0_32 = arith.constant 0 : index
    %c128 = arith.constant 128 : index
    %62 = vector.load %arg12[%c0_32, %c128] : memref<8x256xf32, #tpu.memory_space<vmem>>, vector<4x128xf32>
    tpu.vector_store %arg12[%c0_32, %c128], %61 {strides = array<i32>} : memref<8x256xf32, #tpu.memory_space<vmem>>, vector<4x128xf32>,
    %cst_33 = arith.constant dense<0.000000e+00> : vector<4x128xf32>
    %63 = tpu.matmul %60, %42, %cst_33 {dimension_numbers = #tpu.dot_dimension_numbers<[1], [0], [0], [1], [0, 0, 1, 1], [], []>} : vector<4x16xbf16>, vector<16x128xbf16>, vector<4x128xf32> -> vector<4x128xf32>
    %c4_34 = arith.constant 4 : index
    %c128_35 = arith.constant 128 : index
    %64 = vector.load %arg12[%c4_34, %c128_35] : memref<8x256xf32, #tpu.memory_space<vmem>>, vector<4x128xf32>
    tpu.vector_store %arg12[%c4_34, %c128_35], %63 {strides = array<i32>} : memref<8x256xf32, #tpu.memory_space<vmem>>, vector<4x128xf32>,
    %c0_36 = arith.constant 0 : index
    %c0_37 = arith.constant 0 : index
    %65 = vector.load %arg6[%c0_36, %c0_37] : memref<8x8xbf16, #tpu.memory_space<vmem>>, vector<8x8xbf16>
    %c0_38 = arith.constant 0 : index
    %c0_39 = arith.constant 0 : index
    %66 = vector.load %arg12[%c0_38, %c0_39] : memref<8x256xf32, #tpu.memory_space<vmem>>, vector<8x256xf32>
    %67 = arith.truncf %66 : vector<8x256xf32> to vector<8x256xbf16>
    %cst_40 = arith.constant dense<0.000000e+00> : vector<8x256xf32>
    %68 = tpu.matmul %65, %67, %cst_40 {dimension_numbers = #tpu.dot_dimension_numbers<[1], [0], [0], [1], [0, 0, 1, 1], [], []>} : vector<8x8xbf16>, vector<8x256xbf16>, vector<8x256xf32> -> vector<8x256xf32>
    %cst_41 = arith.constant dense<0.000000e+00> : vector<8xf32>
    %69 = vector.multi_reduction <add>, %68, %cst_41 [1] : vector<8x256xf32> to vector<8xf32>
    %70 = vector.shape_cast %69 : vector<8xf32> to vector<8x1xf32>
    %cst_42 = arith.constant 0.055555556 : f32
    %71 = vector.broadcast %cst_42 : f32 to vector<8x1xf32>
    %72 = arith.mulf %70, %71 : vector<8x1xf32>
    %73 = vector.broadcast %72 : vector<8x1xf32> to vector<8x256xf32>
    %74 = arith.subf %68, %73 : vector<8x256xf32>
    %75 = arith.mulf %74, %74 : vector<8x256xf32>
    %cst_43 = arith.constant dense<0.000000e+00> : vector<8xf32>
    %76 = vector.multi_reduction <add>, %75, %cst_43 [1] : vector<8x256xf32> to vector<8xf32>
    %77 = vector.shape_cast %76 : vector<8xf32> to vector<8x1xf32>
    %cst_44 = arith.constant 2.380000e+02 : f32
    %78 = vector.broadcast %cst_44 : f32 to vector<8x1xf32>
    %79 = arith.mulf %78, %72 : vector<8x1xf32>
    %80 = arith.mulf %79, %72 : vector<8x1xf32>
    %81 = arith.subf %77, %80 : vector<8x1xf32>
    %cst_45 = arith.constant 0.055555556 : f32
    %82 = vector.broadcast %cst_45 : f32 to vector<8x1xf32>
    %83 = arith.mulf %81, %82 : vector<8x1xf32>
    %c0_46 = arith.constant 0 : index
    %c0_47 = arith.constant 0 : index
    %84 = vector.load %arg7[%c0_46, %c0_47] : memref<8x1xf32, #tpu.memory_space<vmem>>, vector<8x1xf32>
    %cst_48 = arith.constant 9.99999974E-6 : f32
    %85 = vector.broadcast %cst_48 : f32 to vector<8x1xf32>
    %86 = arith.addf %83, %85 : vector<8x1xf32>
    %87 = math.rsqrt %86 : vector<8x1xf32>
    %88 = arith.mulf %84, %87 : vector<8x1xf32>
    %c0_49 = arith.constant 0 : index
    %c0_50 = arith.constant 0 : index
    %89 = vector.load %arg8[%c0_49, %c0_50] : memref<8x1xf32, #tpu.memory_space<vmem>>, vector<8x1xf32>
    %90 = arith.mulf %72, %88 : vector<8x1xf32>
    %91 = arith.subf %89, %90 : vector<8x1xf32>
    %92 = vector.broadcast %88 : vector<8x1xf32> to vector<8x256xf32>
    %93 = arith.mulf %68, %92 : vector<8x256xf32>
    %94 = vector.broadcast %91 : vector<8x1xf32> to vector<8x256xf32>
    %95 = arith.addf %93, %94 : vector<8x256xf32>
    %cst_51 = arith.constant 0.000000e+00 : f32
    %96 = vector.broadcast %cst_51 : f32 to vector<8x256xf32>
    %97 = arith.maximumf %95, %96 : vector<8x256xf32>
    %98 = arith.truncf %97 : vector<8x256xf32> to vector<8x256xbf16>
    %c0_52 = arith.constant 0 : index
    %c0_53 = arith.constant 0 : index
    %99 = vector.load %arg9[%c0_52, %c0_53] : memref<256x16xbf16, #tpu.memory_space<vmem>>, vector<256x16xbf16>
    %c0_54 = arith.constant 0 : index
    %c0_55 = arith.constant 0 : index
    %100 = vector.load %arg10[%c0_54, %c0_55] : memref<8x4xbf16, #tpu.memory_space<vmem>>, vector<8x4xbf16>
    %101 = vector.extract_strided_slice %98 {offsets = [0, 0], sizes = [4, 128], strides = [1, 1]} : vector<8x256xbf16> to vector<4x128xbf16>
    %102 = vector.extract_strided_slice %98 {offsets = [4, 0], sizes = [4, 128], strides = [1, 1]} : vector<8x256xbf16> to vector<4x128xbf16>
    %103 = tpu.concatenate %101, %102 in 1 : vector<4x128xbf16>, vector<4x128xbf16> -> vector<4x256xbf16>
    %cst_56 = arith.constant dense<0.000000e+00> : vector<4x16xf32>
    %104 = tpu.matmul %103, %99, %cst_56 {dimension_numbers = #tpu.dot_dimension_numbers<[1], [0], [0], [1], [0, 0, 1, 1], [], []>} : vector<4x256xbf16>, vector<256x16xbf16>, vector<4x16xf32> -> vector<4x16xf32>
    %105 = arith.extf %49 : vector<4x16xbf16> to vector<4x16xf32>
    %106 = arith.addf %104, %105 : vector<4x16xf32>
    %107 = arith.truncf %106 : vector<4x16xf32> to vector<4x16xbf16>
    %cst_57 = arith.constant dense<0.000000e+00> : vector<8x16xf32>
    %108 = tpu.matmul %100, %107, %cst_57 {dimension_numbers = #tpu.dot_dimension_numbers<[1], [0], [0], [1], [0, 0, 1, 1], [], []>} : vector<8x4xbf16>, vector<4x16xbf16>, vector<8x16xf32> -> vector<8x16xf32>
    %c0_58 = arith.constant 0 : index
    %c0_59 = arith.constant 0 : index
    %c0_60 = arith.constant 0 : index
    %109 = vector.load %arg11[%c0_58, %c0_59, %c0_60] : memref<2x8x16xf32, #tpu.memory_space<vmem>>, vector<1x8x16xf32>
    %110 = vector.shape_cast %109 : vector<1x8x16xf32> to vector<8x16xf32>
    %111 = vector.shape_cast %108 : vector<8x16xf32> to vector<1x8x16xf32>
    tpu.vector_store %arg11[%c0_58, %c0_59, %c0_60], %111 {strides = array<i32>} : memref<2x8x16xf32, #tpu.memory_space<vmem>>, vector<1x8x16xf32>,
    %112 = vector.extract_strided_slice %98 {offsets = [0, 128], sizes = [4, 128], strides = [1, 1]} : vector<8x256xbf16> to vector<4x128xbf16>
    %113 = vector.extract_strided_slice %98 {offsets = [4, 128], sizes = [4, 128], strides = [1, 1]} : vector<8x256xbf16> to vector<4x128xbf16>
    %114 = tpu.concatenate %112, %113 in 1 : vector<4x128xbf16>, vector<4x128xbf16> -> vector<4x256xbf16>
    %cst_61 = arith.constant dense<0.000000e+00> : vector<4x16xf32>
    %115 = tpu.matmul %114, %99, %cst_61 {dimension_numbers = #tpu.dot_dimension_numbers<[1], [0], [0], [1], [0, 0, 1, 1], [], []>} : vector<4x256xbf16>, vector<256x16xbf16>, vector<4x16xf32> -> vector<4x16xf32>
    %116 = arith.extf %60 : vector<4x16xbf16> to vector<4x16xf32>
    %117 = arith.addf %115, %116 : vector<4x16xf32>
    %118 = arith.truncf %117 : vector<4x16xf32> to vector<4x16xbf16>
    %cst_62 = arith.constant dense<0.000000e+00> : vector<8x16xf32>
    %119 = tpu.matmul %100, %118, %cst_62 {dimension_numbers = #tpu.dot_dimension_numbers<[1], [0], [0], [1], [0, 0, 1, 1], [], []>} : vector<8x4xbf16>, vector<4x16xbf16>, vector<8x16xf32> -> vector<8x16xf32>
    %c1_63 = arith.constant 1 : index
    %c0_64 = arith.constant 0 : index
    %c0_65 = arith.constant 0 : index
    %120 = vector.load %arg11[%c1_63, %c0_64, %c0_65] : memref<2x8x16xf32, #tpu.memory_space<vmem>>, vector<1x8x16xf32>
    %121 = vector.shape_cast %120 : vector<1x8x16xf32> to vector<8x16xf32>
    %122 = vector.shape_cast %119 : vector<8x16xf32> to vector<1x8x16xf32>
    tpu.vector_store %arg11[%c1_63, %c0_64, %c0_65], %122 {strides = array<i32>} : memref<2x8x16xf32, #tpu.memory_space<vmem>>, vector<1x8x16xf32>,
    return
  }
}

</mosaic_0001>

<llo_original>
// kernel: tpu_custom_call.1
$region0: #{tpu_custom_call.1}
  #allocation0 [shape = 'u32[]', space=smem, size = 0x4, offset = 0x4, fixed_abs, tag = 'smem constant byte address 0x4 - core index']
  #allocation1 [shape = 'u32[144,128]{1,0:T(1,128)}', space=vmem, size = 0x12000, scoped, tag = 'internal scratch']
  #allocation2 [shape = 'f32[8,256]{1,0:T(8,128)}', space=vmem, size = 0x2000, scoped, tag = 'scratch operand']
  %s0 = inlined_call_operand.vmem [shape: f32[2,4,16], index: 0, kind: input, shape index: {}]
  %s1 = inlined_call_operand.vmem [shape: bf16[4,4], index: 1, kind: input, shape index: {}]
  %s2 = inlined_call_operand.vmem [shape: f32[4,1], index: 2, kind: input, shape index: {}]
  %s3 = inlined_call_operand.vmem [shape: f32[4,1], index: 3, kind: input, shape index: {}]
  %s4 = inlined_call_operand.vmem [shape: bf16[16,128], index: 4, kind: input, shape index: {}]
  %s5 = inlined_call_operand.vmem [shape: bf16[16,128], index: 5, kind: input, shape index: {}]
  %s6 = inlined_call_operand.vmem [shape: bf16[8,8], index: 6, kind: input, shape index: {}]
  %s7 = inlined_call_operand.vmem [shape: f32[8,1], index: 7, kind: input, shape index: {}]
  %s8 = inlined_call_operand.vmem [shape: f32[8,1], index: 8, kind: input, shape index: {}]
  %s9 = inlined_call_operand.vmem [shape: bf16[256,16], index: 9, kind: input, shape index: {}]
  %s10 = inlined_call_operand.vmem [shape: bf16[8,4], index: 10, kind: input, shape index: {}]
  %s11 = inlined_call_operand.hbm [shape: f32[2,8,16], index: 11, kind: output, shape index: {}]
  %s12 = sld [smem:[#allocation0]]
  $region54: #{tpu_custom_call.1} parent=0
    _
  %s14 = ssub.s32 1, %s12
  %s15 = scalar_select 0, %s14, %s12
  $region1: #{tpu_custom_call.1} parent=0
    #allocation3 [shape = 'u8[8192]{0}', space=vmem, size = 0x2000, scoped, tag = 'output window, operand 0, single buffered']
    #allocation4 [shape = 's32[1]{0}', space=sflag, size = 0x4, scoped, tag = 'scoped memory for tpu_custom_call.1']
    %16 = vsyncpa [#allocation4], 0
    // Predicated region
    $region2: #{tpu_custom_call.1} parent=1 // pred_check
      _
    $region3: #{tpu_custom_call.1} parent=1 // pred_check_branch
      %18 = sbr.rel (0) target = $region5
    $region4: #{tpu_custom_call.1} parent=1 // pred_region
      _
    $region5: #{tpu_custom_call.1} parent=1 // pred_fallthru
      _
    // Predicated region
    $region6: #{tpu_custom_call.1} parent=1 // pred_check
      _
    $region7: #{tpu_custom_call.1} parent=1 // pred_check_branch
      %20 = sbr.rel (0) target = $region9
    $region8: #{tpu_custom_call.1} parent=1 // pred_region
      _
    $region9: #{tpu_custom_call.1} parent=1 // pred_fallthru
      _
    // Predicated region
    $region10: #{tpu_custom_call.1} parent=1 // pred_check
      _
    $region11: #{tpu_custom_call.1} parent=1 // pred_check_branch
      %22 = sbr.rel (0) target = $region13
    $region12: #{tpu_custom_call.1} parent=1 // pred_region
      _
    $region13: #{tpu_custom_call.1} parent=1 // pred_fallthru
      _
    // Predicated region
    $region14: #{tpu_custom_call.1} parent=1 // pred_check
      _
    $region15: #{tpu_custom_call.1} parent=1 // pred_check_branch
      %24 = sbr.rel (0) target = $region17
    $region16: #{tpu_custom_call.1} parent=1 // pred_region
      _
    $region17: #{tpu_custom_call.1} parent=1 // pred_fallthru
      _
    // Predicated region
    $region18: #{tpu_custom_call.1} parent=1 // pred_check
      _
    $region19: #{tpu_custom_call.1} parent=1 // pred_check_branch
      %26 = sbr.rel (0) target = $region21
    $region20: #{tpu_custom_call.1} parent=1 // pred_region
      _
    $region21: #{tpu_custom_call.1} parent=1 // pred_fallthru
      _
    // Predicated region
    $region22: #{tpu_custom_call.1} parent=1 // pred_check
      _
    $region23: #{tpu_custom_call.1} parent=1 // pred_check_branch
      %28 = sbr.rel (0) target = $region25
    $region24: #{tpu_custom_call.1} parent=1 // pred_region
      _
    $region25: #{tpu_custom_call.1} parent=1 // pred_fallthru
      _
    // Predicated region
    $region26: #{tpu_custom_call.1} parent=1 // pred_check
      _
    $region27: #{tpu_custom_call.1} parent=1 // pred_check_branch
      %30 = sbr.rel (0) target = $region29
    $region28: #{tpu_custom_call.1} parent=1 // pred_region
      _
    $region29: #{tpu_custom_call.1} parent=1 // pred_fallthru
      _
    // Predicated region
    $region30: #{tpu_custom_call.1} parent=1 // pred_check
      _
    $region31: #{tpu_custom_call.1} parent=1 // pred_check_branch
      %32 = sbr.rel (0) target = $region33
    $region32: #{tpu_custom_call.1} parent=1 // pred_region
      _
    $region33: #{tpu_custom_call.1} parent=1 // pred_fallthru
      _
    // Predicated region
    $region34: #{tpu_custom_call.1} parent=1 // pred_check
      _
    $region35: #{tpu_custom_call.1} parent=1 // pred_check_branch
      %34 = sbr.rel (0) target = $region37
    $region36: #{tpu_custom_call.1} parent=1 // pred_region
      _
    $region37: #{tpu_custom_call.1} parent=1 // pred_fallthru
      _
    // Predicated region
    $region38: #{tpu_custom_call.1} parent=1 // pred_check
      _
    $region39: #{tpu_custom_call.1} parent=1 // pred_check_branch
      %36 = sbr.rel (0) target = $region41
    $region40: #{tpu_custom_call.1} parent=1 // pred_region
      _
    $region41: #{tpu_custom_call.1} parent=1 // pred_fallthru
      _
    // Predicated region
    $region42: #{tpu_custom_call.1} parent=1 // pred_check
      _
    $region43: #{tpu_custom_call.1} parent=1 // pred_check_branch
      %38 = sbr.rel (0) target = $region45
    $region44: #{tpu_custom_call.1} parent=1 // pred_region
      _
    $region45: #{tpu_custom_call.1} parent=1 // pred_fallthru
      _
    %v40 = vld [vmem:[%s1] sm:$0x3]
    %v41 = vld [vmem:[%s0] sm:$0xf]
    %v42 = vpack.c.bf16 %v41, %v41
    %vm43 = vcmask 31744
    %v45 = vsel %vm43, %v40, 0
    %vm47 = vcmask 1041408
    %v49 = vsel %vm47, %v42, 0
    %51 = vmatprep.subr.bf16.mxu0 0
    %52 = vmatpush1.bf16.msra.mxu0 %v49
    %53 = vmatprep.subr.bf16.mxu0 0
    %54 = vmatpush1.bf16.msra.mxu0 0
    %55 = vmatprep.subr.bf16.mxu0 0
    %56 = vmatpush1.bf16.msra.mxu0 0
    %57 = vmatprep.subr.bf16.mxu0 0
    %58 = vmatpush1.bf16.msra.mxu0 0
    %59 = vmatprep.subr.bf16.mxu0 0
    %60 = vmatpush1.bf16.msra.mxu0 0
    %61 = vmatprep.subr.bf16.mxu0 0
    %62 = vmatpush1.bf16.msra.mxu0 0
    %63 = vmatprep.subr.bf16.mxu0 0
    %64 = vmatpush1.bf16.msra.mxu0 0
    %65 = vmatprep.subr.bf16.mxu0 0
    %66 = vmatpush1.bf16.msra.mxu0 0
    %67 = vmatprep.subr.bf16.mxu0 0
    %68 = vmatpush1.bf16.msra.mxu0 0
    %69 = vmatprep.subr.bf16.mxu0 0
    %70 = vmatpush1.bf16.msra.mxu0 0
    %71 = vmatprep.subr.bf16.mxu0 0
    %72 = vmatpush1.bf16.msra.mxu0 0
    %73 = vmatprep.subr.bf16.mxu0 0
    %74 = vmatpush1.bf16.msra.mxu0 0
    %75 = vmatprep.subr.bf16.mxu0 0
    %76 = vmatpush1.bf16.msra.mxu0 0
    %77 = vmatprep.subr.bf16.mxu0 0
    %78 = vmatpush1.bf16.msra.mxu0 0
    %79 = vmatprep.subr.bf16.mxu0 0
    %80 = vmatpush1.bf16.msra.mxu0 0
    %81 = vmatprep.subr.bf16.mxu0 0
    %82 = vmatpush1.bf16.msra.mxu0 0
    %83 = vmatprep.mubr.bf16.mxu0 0
    %84 = vmatmul.mubr.bf16.gmra.mrb[0].mxu0 %v45
    %v85 = vpop.f32.mrb[0].mxu0
    %v86 = vadd.f32 0.0, %v85
    %v87 = vpop.f32.mrb[0].mxu0
    %v88 = vpop.f32.mrb[0].mxu0
    %v89 = vpop.f32.mrb[0].mxu0
    %90 = vdwg.mxu0
    %vm91 = vcmask 125952
    %v92 = vsel %vm91, %v86, 0.0
    %93 = vadd.xlane.f32.xlu0 %v92
    %v94 = vpop.xlane.xlu0 %93
    %v95 = vadd.f32 %v94, 0.0
    %s96 = scalar_lea.vmem %s0, 4
    %v97 = vld [vmem:[%s96] sm:$0xf]
    %v98 = vpack.c.bf16 %v97, %v97
    %v100 = vsel %vm47, %v98, 0
    %102 = vmatprep.subr.bf16.mxu0 0
    %103 = vmatpush1.bf16.msra.mxu0 %v100
    %104 = vmatprep.subr.bf16.mxu0 0
    %105 = vmatpush1.bf16.msra.mxu0 0
    %106 = vmatprep.subr.bf16.mxu0 0
    %107 = vmatpush1.bf16.msra.mxu0 0
    %108 = vmatprep.subr.bf16.mxu0 0
    %109 = vmatpush1.bf16.msra.mxu0 0
    %110 = vmatprep.subr.bf16.mxu0 0
    %111 = vmatpush1.bf16.msra.mxu0 0
    %112 = vmatprep.subr.bf16.mxu0 0
    %113 = vmatpush1.bf16.msra.mxu0 0
    %114 = vmatprep.subr.bf16.mxu0 0
    %115 = vmatpush1.bf16.msra.mxu0 0
    %116 = vmatprep.subr.bf16.mxu0 0
    %117 = vmatpush1.bf16.msra.mxu0 0
    %118 = vmatprep.subr.bf16.mxu0 0
    %119 = vmatpush1.bf16.msra.mxu0 0
    %120 = vmatprep.subr.bf16.mxu0 0
    %121 = vmatpush1.bf16.msra.mxu0 0
    %122 = vmatprep.subr.bf16.mxu0 0
    %123 = vmatpush1.bf16.msra.mxu0 0
    %124 = vmatprep.subr.bf16.mxu0 0
    %125 = vmatpush1.bf16.msra.mxu0 0
    %126 = vmatprep.subr.bf16.mxu0 0
    %127 = vmatpush1.bf16.msra.mxu0 0
    %128 = vmatprep.subr.bf16.mxu0 0
    %129 = vmatpush1.bf16.msra.mxu0 0
    %130 = vmatprep.subr.bf16.mxu0 0
    %131 = vmatpush1.bf16.msra.mxu0 0
    %132 = vmatprep.subr.bf16.mxu0 0
    %133 = vmatpush1.bf16.msra.mxu0 0
    %134 = vmatprep.mubr.bf16.mxu0 0
    %135 = vmatmul.mubr.bf16.gmra.mrb[0].mxu0 %v45
    %v136 = vpop.f32.mrb[0].mxu0
    %v137 = vadd.f32 0.0, %v136
    %v138 = vpop.f32.mrb[0].mxu0
    %v139 = vpop.f32.mrb[0].mxu0
    %v140 = vpop.f32.mrb[0].mxu0
    %141 = vdwg.mxu0
    %v142 = vsel %vm91, %v137, 0.0
    %143 = vadd.xlane.f32.xlu0 %v142
    %v144 = vpop.xlane.xlu0 %143
    %v145 = vadd.f32 %v95, %v144
    %v146 = vmul.f32 %v145, 0.03125
    %v147 = vsub.f32 %v86, %v146
    %v148 = vmul.f32 %v147, %v147
    %v149 = vsel %vm91, %v148, 0.0
    %150 = vadd.xlane.f32.xlu0 %v149
    %v151 = vpop.xlane.xlu0 %150
    %v152 = vadd.f32 %v151, 0.0
    %v153 = vsub.f32 %v137, %v146
    %v154 = vmul.f32 %v153, %v153
    %v155 = vsel %vm91, %v154, 0.0
    %156 = vadd.xlane.f32.xlu0 %v155
    %v157 = vpop.xlane.xlu0 %156
    %v158 = vadd.f32 %v152, %v157
    %v159 = vmul.f32 %v158, 0.03125
    %v160 = vld [vmem:[%s2] sm:$0xf]
    %v161 = vadd.f32 %v159, 1e-05
    %v162 = vrsqrt.pop %v161
    %v163 = vmul.f32 %v160, %v162
    %v164 = vld [vmem:[%s3] sm:$0xf]
    %v165 = vmul.f32 %v146, %v163
    %v166 = vsub.f32 %v164, %v165
    %v167 = vld [vmem:[%s4] sm:$0xf]
    %v168 = vld [vmem:[%s4 + $0x4] sm:$0xf]
    %v169 = vld [vmem:[%s5] sm:$0xf]
    %v170 = vld [vmem:[%s5 + $0x4] sm:$0xf]
    %172 = vset.pattern.permute.xlu0 0
    %173 = vperm.xlu0 %172, %v163
    %v174 = vpop.permute.xlu0 %173
    %v176 = vmul.f32 %v86, %v174
    %178 = vset.pattern.permute.xlu0 0
    %179 = vperm.xlu0 %178, %v166
    %v180 = vpop.permute.xlu0 %179
    %v182 = vadd.f32 %v176, %v180
    %v183 = vmax.f32 %v182, 0.0
    %v184 = vpack.c.bf16 %v183, %v183
    %v187 = vunpack.c.l.b16 %v167
    %v188 = vunpack.c.l.b16 %v168
    %v189 = vpack.c.b16 %v188, %v187
    %vm191 = vcmask 130048
    %v193 = vsel %vm191, %v184, 0
    %195 = vmatprep.subr.bf16.mxu0 0
    %196 = vmatpush1.bf16.msra.mxu0 %v189
    %197 = vmatprep.subr.bf16.mxu0 0
    %198 = vmatpush1.bf16.msra.mxu0 0
    %199 = vmatprep.subr.bf16.mxu0 0
    %200 = vmatpush1.bf16.msra.mxu0 0
    %201 = vmatprep.subr.bf16.mxu0 0
    %202 = vmatpush1.bf16.msra.mxu0 0
    %203 = vmatprep.subr.bf16.mxu0 0
    %204 = vmatpush1.bf16.msra.mxu0 0
    %205 = vmatprep.subr.bf16.mxu0 0
    %206 = vmatpush1.bf16.msra.mxu0 0
    %207 = vmatprep.subr.bf16.mxu0 0
    %208 = vmatpush1.bf16.msra.mxu0 0
    %209 = vmatprep.subr.bf16.mxu0 0
    %210 = vmatpush1.bf16.msra.mxu0 0
    %211 = vmatprep.subr.bf16.mxu0 0
    %212 = vmatpush1.bf16.msra.mxu0 0
    %213 = vmatprep.subr.bf16.mxu0 0
    %214 = vmatpush1.bf16.msra.mxu0 0
    %215 = vmatprep.subr.bf16.mxu0 0
    %216 = vmatpush1.bf16.msra.mxu0 0
    %217 = vmatprep.subr.bf16.mxu0 0
    %218 = vmatpush1.bf16.msra.mxu0 0
    %219 = vmatprep.subr.bf16.mxu0 0
    %220 = vmatpush1.bf16.msra.mxu0 0
    %221 = vmatprep.subr.bf16.mxu0 0
    %222 = vmatpush1.bf16.msra.mxu0 0
    %223 = vmatprep.subr.bf16.mxu0 0
    %224 = vmatpush1.bf16.msra.mxu0 0
    %225 = vmatprep.subr.bf16.mxu0 0
    %226 = vmatpush1.bf16.msra.mxu0 0
    %227 = vmatprep.mubr.bf16.mxu0 0
    %228 = vmatmul.mubr.bf16.gmra.mrb[0].mxu0 %v193
    %v229 = vpop.f32.mrb[0].mxu0
    %v230 = vadd.f32 0.0, %v229
    %v231 = vpop.f32.mrb[0].mxu0
    %v232 = vpop.f32.mrb[0].mxu0
    %v233 = vpop.f32.mrb[0].mxu0
    %234 = vdwg.mxu0
    %235 = vst [vmem:[#allocation2] sm:$0xf] %v230
    %v238 = vunpack.c.l.b16 %v169
    %v239 = vunpack.c.l.b16 %v170
    %v240 = vpack.c.b16 %v239, %v238
    %242 = vmatprep.subr.bf16.mxu0 0
    %243 = vmatpush1.bf16.msra.mxu0 %v240
    %244 = vmatprep.subr.bf16.mxu0 0
    %245 = vmatpush1.bf16.msra.mxu0 0
    %246 = vmatprep.subr.bf16.mxu0 0
    %247 = vmatpush1.bf16.msra.mxu0 0
    %248 = vmatprep.subr.bf16.mxu0 0
    %249 = vmatpush1.bf16.msra.mxu0 0
    %250 = vmatprep.subr.bf16.mxu0 0
    %251 = vmatpush1.bf16.msra.mxu0 0
    %252 = vmatprep.subr.bf16.mxu0 0
    %253 = vmatpush1.bf16.msra.mxu0 0
    %254 = vmatprep.subr.bf16.mxu0 0
    %255 = vmatpush1.bf16.msra.mxu0 0
    %256 = vmatprep.subr.bf16.mxu0 0
    %257 = vmatpush1.bf16.msra.mxu0 0
    %258 = vmatprep.subr.bf16.mxu0 0
    %259 = vmatpush1.bf16.msra.mxu0 0
    %260 = vmatprep.subr.bf16.mxu0 0
    %261 = vmatpush1.bf16.msra.mxu0 0
    %262 = vmatprep.subr.bf16.mxu0 0
    %263 = vmatpush1.bf16.msra.mxu0 0
    %264 = vmatprep.subr.bf16.mxu0 0
    %265 = vmatpush1.bf16.msra.mxu0 0
    %266 = vmatprep.subr.bf16.mxu0 0
    %267 = vmatpush1.bf16.msra.mxu0 0
    %268 = vmatprep.subr.bf16.mxu0 0
    %269 = vmatpush1.bf16.msra.mxu0 0
    %270 = vmatprep.subr.bf16.mxu0 0
    %271 = vmatpush1.bf16.msra.mxu0 0
    %272 = vmatprep.subr.bf16.mxu0 0
    %273 = vmatpush1.bf16.msra.mxu0 0
    %274 = vmatprep.mubr.bf16.mxu0 0
    %275 = vmatmul.mubr.bf16.gmra.mrb[0].mxu0 %v193
    %v276 = vpop.f32.mrb[0].mxu0
    %v277 = vadd.f32 0.0, %v276
    %v278 = vpop.f32.mrb[0].mxu0
    %v279 = vpop.f32.mrb[0].mxu0
    %v280 = vpop.f32.mrb[0].mxu0
    %281 = vdwg.mxu0
    %v283 = vrot.slane %v277, 4
    %285 = vst [vmem:[#allocation2] sm:$0xf0] %v283
    %v286 = vmul.f32 %v137, %v174
    %v287 = vadd.f32 %v286, %v180
    %v288 = vmax.f32 %v287, 0.0
    %v289 = vpack.c.bf16 %v288, %v288
    %v291 = vsel %vm191, %v289, 0
    %293 = vmatprep.subr.bf16.mxu0 0
    %294 = vmatpush1.bf16.msra.mxu0 %v189
    %295 = vmatprep.subr.bf16.mxu0 0
    %296 = vmatpush1.bf16.msra.mxu0 0
    %297 = vmatprep.subr.bf16.mxu0 0
    %298 = vmatpush1.bf16.msra.mxu0 0
    %299 = vmatprep.subr.bf16.mxu0 0
    %300 = vmatpush1.bf16.msra.mxu0 0
    %301 = vmatprep.subr.bf16.mxu0 0
    %302 = vmatpush1.bf16.msra.mxu0 0
    %303 = vmatprep.subr.bf16.mxu0 0
    %304 = vmatpush1.bf16.msra.mxu0 0
    %305 = vmatprep.subr.bf16.mxu0 0
    %306 = vmatpush1.bf16.msra.mxu0 0
    %307 = vmatprep.subr.bf16.mxu0 0
    %308 = vmatpush1.bf16.msra.mxu0 0
    %309 = vmatprep.subr.bf16.mxu0 0
    %310 = vmatpush1.bf16.msra.mxu0 0
    %311 = vmatprep.subr.bf16.mxu0 0
    %312 = vmatpush1.bf16.msra.mxu0 0
    %313 = vmatprep.subr.bf16.mxu0 0
    %314 = vmatpush1.bf16.msra.mxu0 0
    %315 = vmatprep.subr.bf16.mxu0 0
    %316 = vmatpush1.bf16.msra.mxu0 0
    %317 = vmatprep.subr.bf16.mxu0 0
    %318 = vmatpush1.bf16.msra.mxu0 0
    %319 = vmatprep.subr.bf16.mxu0 0
    %320 = vmatpush1.bf16.msra.mxu0 0
    %321 = vmatprep.subr.bf16.mxu0 0
    %322 = vmatpush1.bf16.msra.mxu0 0
    %323 = vmatprep.subr.bf16.mxu0 0
    %324 = vmatpush1.bf16.msra.mxu0 0
    %325 = vmatprep.mubr.bf16.mxu0 0
    %326 = vmatmul.mubr.bf16.gmra.mrb[0].mxu0 %v291
    %v327 = vpop.f32.mrb[0].mxu0
    %v328 = vadd.f32 0.0, %v327
    %v329 = vpop.f32.mrb[0].mxu0
    %v330 = vpop.f32.mrb[0].mxu0
    %v331 = vpop.f32.mrb[0].mxu0
    %332 = vdwg.mxu0
    %333 = vst [vmem:[#allocation2 + $0x8] sm:$0xf] %v328
    %334 = vmatprep.subr.bf16.mxu0 0
    %335 = vmatpush1.bf16.msra.mxu0 %v240
    %336 = vmatprep.subr.bf16.mxu0 0
    %337 = vmatpush1.bf16.msra.mxu0 0
    %338 = vmatprep.subr.bf16.mxu0 0
    %339 = vmatpush1.bf16.msra.mxu0 0
    %340 = vmatprep.subr.bf16.mxu0 0
    %341 = vmatpush1.bf16.msra.mxu0 0
    %342 = vmatprep.subr.bf16.mxu0 0
    %343 = vmatpush1.bf16.msra.mxu0 0
    %344 = vmatprep.subr.bf16.mxu0 0
    %345 = vmatpush1.bf16.msra.mxu0 0
    %346 = vmatprep.subr.bf16.mxu0 0
    %347 = vmatpush1.bf16.msra.mxu0 0
    %348 = vmatprep.subr.bf16.mxu0 0
    %349 = vmatpush1.bf16.msra.mxu0 0
    %350 = vmatprep.subr.bf16.mxu0 0
    %351 = vmatpush1.bf16.msra.mxu0 0
    %352 = vmatprep.subr.bf16.mxu0 0
    %353 = vmatpush1.bf16.msra.mxu0 0
    %354 = vmatprep.subr.bf16.mxu0 0
    %355 = vmatpush1.bf16.msra.mxu0 0
    %356 = vmatprep.subr.bf16.mxu0 0
    %357 = vmatpush1.bf16.msra.mxu0 0
    %358 = vmatprep.subr.bf16.mxu0 0
    %359 = vmatpush1.bf16.msra.mxu0 0
    %360 = vmatprep.subr.bf16.mxu0 0
    %361 = vmatpush1.bf16.msra.mxu0 0
    %362 = vmatprep.subr.bf16.mxu0 0
    %363 = vmatpush1.bf16.msra.mxu0 0
    %364 = vmatprep.subr.bf16.mxu0 0
    %365 = vmatpush1.bf16.msra.mxu0 0
    %366 = vmatprep.mubr.bf16.mxu0 0
    %367 = vmatmul.mubr.bf16.gmra.mrb[0].mxu0 %v291
    %v368 = vpop.f32.mrb[0].mxu0
    %v369 = vadd.f32 0.0, %v368
    %v370 = vpop.f32.mrb[0].mxu0
    %v371 = vpop.f32.mrb[0].mxu0
    %v372 = vpop.f32.mrb[0].mxu0
    %373 = vdwg.mxu0
    %v375 = vrot.slane %v369, 4
    %377 = vst [vmem:[#allocation2 + $0x8] sm:$0xf0] %v375
    %v378 = vld [vmem:[%s6] sm:$0xf]
    %v379 = vld [vmem:[#allocation2] sm:$0xff]
    %v380 = vld [vmem:[#allocation2 + $0x8] sm:$0xff]
    %v381 = vpack.c.bf16 %v379, %v379
    %v382 = vpack.c.bf16 %v380, %v380
    %vm383 = vcmask 64512
    %v385 = vsel %vm383, %v378, 0
    %vm387 = vcmask 1043456
    %v389 = vsel %vm387, %v381, 0
    %v392 = vsel %vm387, %v382, 0
    %394 = vmatprep.subr.bf16.mxu0 %v392
    %395 = vmatpush1.bf16.msra.mxu0 %v389
    %396 = vmatprep.subr.bf16.mxu0 0
    %397 = vmatpush1.bf16.msra.mxu0 0
    %398 = vmatprep.subr.bf16.mxu0 0
    %399 = vmatpush1.bf16.msra.mxu0 0
    %400 = vmatprep.subr.bf16.mxu0 0
    %401 = vmatpush1.bf16.msra.mxu0 0
    %402 = vmatprep.subr.bf16.mxu0 0
    %403 = vmatpush1.bf16.msra.mxu0 0
    %404 = vmatprep.subr.bf16.mxu0 0
    %405 = vmatpush1.bf16.msra.mxu0 0
    %406 = vmatprep.subr.bf16.mxu0 0
    %407 = vmatpush1.bf16.msra.mxu0 0
    %408 = vmatprep.subr.bf16.mxu0 0
    %409 = vmatpush1.bf16.msra.mxu0 0
    %410 = vmatprep.subr.bf16.mxu0 0
    %411 = vmatpush1.bf16.msra.mxu0 0
    %412 = vmatprep.subr.bf16.mxu0 0
    %413 = vmatpush1.bf16.msra.mxu0 0
    %414 = vmatprep.subr.bf16.mxu0 0
    %415 = vmatpush1.bf16.msra.mxu0 0
    %416 = vmatprep.subr.bf16.mxu0 0
    %417 = vmatpush1.bf16.msra.mxu0 0
    %418 = vmatprep.subr.bf16.mxu0 0
    %419 = vmatpush1.bf16.msra.mxu0 0
    %420 = vmatprep.subr.bf16.mxu0 0
    %421 = vmatpush1.bf16.msra.mxu0 0
    %422 = vmatprep.subr.bf16.mxu0 0
    %423 = vmatpush1.bf16.msra.mxu0 0
    %424 = vmatprep.subr.bf16.mxu0 0
    %425 = vmatpush1.bf16.msra.mxu0 0
    %426 = vmatprep.mubr.bf16.mxu0 0
    %427 = vmatmul.mubr.bf16.gmra.mrb[0].mxu0 %v385
    %v428 = vpop.f32.mrb[0].mxu0
    %v429 = vadd.f32 0.0, %v428
    %v430 = vpop.f32.mrb[0].mxu0
    %v431 = vadd.f32 0.0, %v430
    %v432 = vpop.f32.mrb[0].mxu0
    %v433 = vpop.f32.mrb[0].mxu0
    %434 = vdwg.mxu0
    %v435 = vadd.f32 %v429, %v431
    %436 = vadd.xlane.f32.xlu0 %v435
    %v437 = vpop.xlane.xlu0 %436
    %v438 = vmul.f32 %v437, 0.055555556
    %v439 = vsub.f32 %v429, %v438
    %v440 = vsub.f32 %v431, %v438
    %v441 = vmul.f32 %v439, %v439
    %v442 = vmul.f32 %v440, %v440
    %v443 = vadd.f32 %v441, %v442
    %444 = vadd.xlane.f32.xlu0 %v443
    %v445 = vpop.xlane.xlu0 %444
    %v446 = vmul.f32 %v438, 238.0
    %v447 = vmul.f32 %v446, %v438
    %v448 = vsub.f32 %v445, %v447
    %v449 = vmul.f32 %v448, 0.055555556
    %v450 = vld [vmem:[%s7] sm:$0xff]
    %v451 = vadd.f32 %v449, 1e-05
    %v452 = vrsqrt.pop %v451
    %v453 = vmul.f32 %v450, %v452
    %v454 = vld [vmem:[%s8] sm:$0xff]
    %v455 = vmul.f32 %v438, %v453
    %v456 = vsub.f32 %v454, %v455
    %458 = vset.pattern.permute.xlu0 0
    %459 = vperm.xlu0 %458, %v453
    %v460 = vpop.permute.xlu0 %459
    %v462 = vmul.f32 %v429, %v460
    %v463 = vmul.f32 %v431, %v460
    %465 = vset.pattern.permute.xlu0 0
    %466 = vperm.xlu0 %465, %v456
    %v467 = vpop.permute.xlu0 %466
    %v469 = vadd.f32 %v462, %v467
    %v470 = vadd.f32 %v463, %v467
    %v471 = vmax.f32 %v469, 0.0
    %v472 = vmax.f32 %v470, 0.0
    %v473 = vpack.c.bf16 %v471, %v471
    %v474 = vpack.c.bf16 %v472, %v472
    %v475 = vld [vmem:[%s9] sm:$0xf]
    %v476 = vld [vmem:[%s9 + $0x4] sm:$0xf]
    %v477 = vld [vmem:[%s9 + $0x8] sm:$0xf]
    %v478 = vld [vmem:[%s9 + $0xc] sm:$0xf]
    %v479 = vld [vmem:[%s9 + $0x10] sm:$0xf]
    %v480 = vld [vmem:[%s9 + $0x14] sm:$0xf]
    %v481 = vld [vmem:[%s9 + $0x18] sm:$0xf]
    %v482 = vld [vmem:[%s9 + $0x1c] sm:$0xf]
    %v483 = vld [vmem:[%s9 + $0x20] sm:$0xf]
    %v484 = vld [vmem:[%s9 + $0x24] sm:$0xf]
    %v485 = vld [vmem:[%s9 + $0x28] sm:$0xf]
    %v486 = vld [vmem:[%s9 + $0x2c] sm:$0xf]
    %v487 = vld [vmem:[%s9 + $0x30] sm:$0xf]
    %v488 = vld [vmem:[%s9 + $0x34] sm:$0xf]
    %v489 = vld [vmem:[%s9 + $0x38] sm:$0xf]
    %v490 = vld [vmem:[%s9 + $0x3c] sm:$0xf]
    %v491 = vld [vmem:[%s9 + $0x40] sm:$0xf]
    %v492 = vld [vmem:[%s9 + $0x44] sm:$0xf]
    %v493 = vld [vmem:[%s9 + $0x48] sm:$0xf]
    %v494 = vld [vmem:[%s9 + $0x4c] sm:$0xf]
    %v495 = vld [vmem:[%s9 + $0x50] sm:$0xf]
    %v496 = vld [vmem:[%s9 + $0x54] sm:$0xf]
    %v497 = vld [vmem:[%s9 + $0x58] sm:$0xf]
    %v498 = vld [vmem:[%s9 + $0x5c] sm:$0xf]
    %v499 = vld [vmem:[%s9 + $0x60] sm:$0xf]
    %v500 = vld [vmem:[%s9 + $0x64] sm:$0xf]
    %v501 = vld [vmem:[%s9 + $0x68] sm:$0xf]
    %v502 = vld [vmem:[%s9 + $0x6c] sm:$0xf]
    %v503 = vld [vmem:[%s9 + $0x70] sm:$0xf]
    %v504 = vld [vmem:[%s9 + $0x74] sm:$0xf]
    %v505 = vld [vmem:[%s9 + $0x78] sm:$0xf]
    %v506 = vld [vmem:[%s9 + $0x7c] sm:$0xf]
    %v507 = vld [vmem:[%s10] sm:$0xf]
    %v509 = vrot.slane %v473, 2
    %v511 = vunpack.c.l.bf16 %v184
    %v544 = vunpack.c.l.b16 %v475
    %v545 = vunpack.c.l.b16 %v476
    %v546 = vunpack.c.l.b16 %v477
    %v547 = vunpack.c.l.b16 %v478
    %v548 = vunpack.c.l.b16 %v479
    %v549 = vunpack.c.l.b16 %v480
    %v550 = vunpack.c.l.b16 %v481
    %v551 = vunpack.c.l.b16 %v482
    %v552 = vunpack.c.l.b16 %v483
    %v553 = vunpack.c.l.b16 %v484
    %v554 = vunpack.c.l.b16 %v485
    %v555 = vunpack.c.l.b16 %v486
    %v556 = vunpack.c.l.b16 %v487
    %v557 = vunpack.c.l.b16 %v488
    %v558 = vunpack.c.l.b16 %v489
    %v559 = vunpack.c.l.b16 %v490
    %v560 = vunpack.c.l.b16 %v491
    %v561 = vunpack.c.l.b16 %v492
    %v562 = vunpack.c.l.b16 %v493
    %v563 = vunpack.c.l.b16 %v494
    %v564 = vunpack.c.l.b16 %v495
    %v565 = vunpack.c.l.b16 %v496
    %v566 = vunpack.c.l.b16 %v497
    %v567 = vunpack.c.l.b16 %v498
    %v568 = vunpack.c.l.b16 %v499
    %v569 = vunpack.c.l.b16 %v500
    %v570 = vunpack.c.l.b16 %v501
    %v571 = vunpack.c.l.b16 %v502
    %v572 = vunpack.c.l.b16 %v503
    %v573 = vunpack.c.l.b16 %v504
    %v574 = vunpack.c.l.b16 %v505
    %v575 = vunpack.c.l.b16 %v506
    %v576 = vpack.c.b16 %v545, %v544
    %v577 = vpack.c.b16 %v547, %v546
    %v578 = vpack.c.b16 %v549, %v548
    %v579 = vpack.c.b16 %v551, %v550
    %v580 = vpack.c.b16 %v553, %v552
    %v581 = vpack.c.b16 %v555, %v554
    %v582 = vpack.c.b16 %v557, %v556
    %v583 = vpack.c.b16 %v559, %v558
    %v584 = vpack.c.b16 %v561, %v560
    %v585 = vpack.c.b16 %v563, %v562
    %v586 = vpack.c.b16 %v565, %v564
    %v587 = vpack.c.b16 %v567, %v566
    %v588 = vpack.c.b16 %v569, %v568
    %v589 = vpack.c.b16 %v571, %v570
    %v590 = vpack.c.b16 %v573, %v572
    %v591 = vpack.c.b16 %v575, %v574
    %608 = vmatprep.subr.bf16.mxu0 0
    %609 = vmatpush1.bf16.msra.mxu0 %v576
    %610 = vmatprep.subr.bf16.mxu0 0
    %611 = vmatpush1.bf16.msra.mxu0 %v577
    %612 = vmatprep.subr.bf16.mxu0 0
    %613 = vmatpush1.bf16.msra.mxu0 %v578
    %614 = vmatprep.subr.bf16.mxu0 0
    %615 = vmatpush1.bf16.msra.mxu0 %v579
    %616 = vmatprep.subr.bf16.mxu0 0
    %617 = vmatpush1.bf16.msra.mxu0 %v580
    %618 = vmatprep.subr.bf16.mxu0 0
    %619 = vmatpush1.bf16.msra.mxu0 %v581
    %620 = vmatprep.subr.bf16.mxu0 0
    %621 = vmatpush1.bf16.msra.mxu0 %v582
    %622 = vmatprep.subr.bf16.mxu0 0
    %623 = vmatpush1.bf16.msra.mxu0 %v583
    %624 = vmatprep.subr.bf16.mxu0 0
    %625 = vmatpush1.bf16.msra.mxu0 %v584
    %626 = vmatprep.subr.bf16.mxu0 0
    %627 = vmatpush1.bf16.msra.mxu0 %v585
    %628 = vmatprep.subr.bf16.mxu0 0
    %629 = vmatpush1.bf16.msra.mxu0 %v586
    %630 = vmatprep.subr.bf16.mxu0 0
    %631 = vmatpush1.bf16.msra.mxu0 %v587
    %632 = vmatprep.subr.bf16.mxu0 0
    %633 = vmatpush1.bf16.msra.mxu0 %v588
    %634 = vmatprep.subr.bf16.mxu0 0
    %635 = vmatpush1.bf16.msra.mxu0 %v589
    %636 = vmatprep.subr.bf16.mxu0 0
    %637 = vmatpush1.bf16.msra.mxu0 %v590
    %638 = vmatprep.subr.bf16.mxu0 0
    %639 = vmatpush1.bf16.msra.mxu0 %v591
    %640 = vmatprep.mubr.bf16.mxu0 %v509
    %641 = vmatmul.mubr.bf16.gmra.mrb[0].mxu0 %v473
    %v642 = vpop.f32.mrb[0].mxu0
    %v643 = vadd.f32 %v511, %v642
    %v644 = vpop.f32.mrb[0].mxu0
    %v645 = vpop.f32.mrb[0].mxu0
    %v646 = vpop.f32.mrb[0].mxu0
    %647 = vdwg.mxu0
    %v648 = vpack.c.bf16 %v643, %v643
    %v650 = vsel %vm43, %v507, 0
    %v653 = vsel %vm47, %v648, 0
    %655 = vmatprep.subr.bf16.mxu0 0
    %656 = vmatpush1.bf16.msra.mxu0 %v653
    %657 = vmatprep.subr.bf16.mxu0 0
    %658 = vmatpush1.bf16.msra.mxu0 0
    %659 = vmatprep.subr.bf16.mxu0 0
    %660 = vmatpush1.bf16.msra.mxu0 0
    %661 = vmatprep.subr.bf16.mxu0 0
    %662 = vmatpush1.bf16.msra.mxu0 0
    %663 = vmatprep.subr.bf16.mxu0 0
    %664 = vmatpush1.bf16.msra.mxu0 0
    %665 = vmatprep.subr.bf16.mxu0 0
    %666 = vmatpush1.bf16.msra.mxu0 0
    %667 = vmatprep.subr.bf16.mxu0 0
    %668 = vmatpush1.bf16.msra.mxu0 0
    %669 = vmatprep.subr.bf16.mxu0 0
    %670 = vmatpush1.bf16.msra.mxu0 0
    %671 = vmatprep.subr.bf16.mxu0 0
    %672 = vmatpush1.bf16.msra.mxu0 0
    %673 = vmatprep.subr.bf16.mxu0 0
    %674 = vmatpush1.bf16.msra.mxu0 0
    %675 = vmatprep.subr.bf16.mxu0 0
    %676 = vmatpush1.bf16.msra.mxu0 0
    %677 = vmatprep.subr.bf16.mxu0 0
    %678 = vmatpush1.bf16.msra.mxu0 0
    %679 = vmatprep.subr.bf16.mxu0 0
    %680 = vmatpush1.bf16.msra.mxu0 0
    %681 = vmatprep.subr.bf16.mxu0 0
    %682 = vmatpush1.bf16.msra.mxu0 0
    %683 = vmatprep.subr.bf16.mxu0 0
    %684 = vmatpush1.bf16.msra.mxu0 0
    %685 = vmatprep.subr.bf16.mxu0 0
    %686 = vmatpush1.bf16.msra.mxu0 0
    %687 = vmatprep.mubr.bf16.mxu0 0
    %688 = vmatmul.mubr.bf16.gmra.mrb[0].mxu0 %v650
    %v689 = vpop.f32.mrb[0].mxu0
    %v690 = vadd.f32 0.0, %v689
    %v691 = vpop.f32.mrb[0].mxu0
    %v692 = vpop.f32.mrb[0].mxu0
    %v693 = vpop.f32.mrb[0].mxu0
    %694 = vdwg.mxu0
    %695 = vst.msk [vmem:[#allocation3] sm:$0xff] %vm191, %v690
    %v697 = vrot.slane %v474, 2
    %v699 = vunpack.c.l.bf16 %v289
    %700 = vmatprep.subr.bf16.mxu0 0
    %701 = vmatpush1.bf16.msra.mxu0 %v576
    %702 = vmatprep.subr.bf16.mxu0 0
    %703 = vmatpush1.bf16.msra.mxu0 %v577
    %704 = vmatprep.subr.bf16.mxu0 0
    %705 = vmatpush1.bf16.msra.mxu0 %v578
    %706 = vmatprep.subr.bf16.mxu0 0
    %707 = vmatpush1.bf16.msra.mxu0 %v579
    %708 = vmatprep.subr.bf16.mxu0 0
    %709 = vmatpush1.bf16.msra.mxu0 %v580
    %710 = vmatprep.subr.bf16.mxu0 0
    %711 = vmatpush1.bf16.msra.mxu0 %v581
    %712 = vmatprep.subr.bf16.mxu0 0
    %713 = vmatpush1.bf16.msra.mxu0 %v582
    %714 = vmatprep.subr.bf16.mxu0 0
    %715 = vmatpush1.bf16.msra.mxu0 %v583
    %716 = vmatprep.subr.bf16.mxu0 0
    %717 = vmatpush1.bf16.msra.mxu0 %v584
    %718 = vmatprep.subr.bf16.mxu0 0
    %719 = vmatpush1.bf16.msra.mxu0 %v585
    %720 = vmatprep.subr.bf16.mxu0 0
    %721 = vmatpush1.bf16.msra.mxu0 %v586
    %722 = vmatprep.subr.bf16.mxu0 0
    %723 = vmatpush1.bf16.msra.mxu0 %v587
    %724 = vmatprep.subr.bf16.mxu0 0
    %725 = vmatpush1.bf16.msra.mxu0 %v588
    %726 = vmatprep.subr.bf16.mxu0 0
    %727 = vmatpush1.bf16.msra.mxu0 %v589
    %728 = vmatprep.subr.bf16.mxu0 0
    %729 = vmatpush1.bf16.msra.mxu0 %v590
    %730 = vmatprep.subr.bf16.mxu0 0
    %731 = vmatpush1.bf16.msra.mxu0 %v591
    %732 = vmatprep.mubr.bf16.mxu0 %v697
    %733 = vmatmul.mubr.bf16.gmra.mrb[0].mxu0 %v474
    %v734 = vpop.f32.mrb[0].mxu0
    %v735 = vadd.f32 %v699, %v734
    %v736 = vpop.f32.mrb[0].mxu0
    %v737 = vpop.f32.mrb[0].mxu0
    %v738 = vpop.f32.mrb[0].mxu0
    %739 = vdwg.mxu0
    %v740 = vpack.c.bf16 %v735, %v735
    %v742 = vsel %vm47, %v740, 0
    %744 = vmatprep.subr.bf16.mxu0 0
    %745 = vmatpush1.bf16.msra.mxu0 %v742
    %746 = vmatprep.subr.bf16.mxu0 0
    %747 = vmatpush1.bf16.msra.mxu0 0
    %748 = vmatprep.subr.bf16.mxu0 0
    %749 = vmatpush1.bf16.msra.mxu0 0
    %750 = vmatprep.subr.bf16.mxu0 0
    %751 = vmatpush1.bf16.msra.mxu0 0
    %752 = vmatprep.subr.bf16.mxu0 0
    %753 = vmatpush1.bf16.msra.mxu0 0
    %754 = vmatprep.subr.bf16.mxu0 0
    %755 = vmatpush1.bf16.msra.mxu0 0
    %756 = vmatprep.subr.bf16.mxu0 0
    %757 = vmatpush1.bf16.msra.mxu0 0
    %758 = vmatprep.subr.bf16.mxu0 0
    %759 = vmatpush1.bf16.msra.mxu0 0
    %760 = vmatprep.subr.bf16.mxu0 0
    %761 = vmatpush1.bf16.msra.mxu0 0
    %762 = vmatprep.subr.bf16.mxu0 0
    %763 = vmatpush1.bf16.msra.mxu0 0
    %764 = vmatprep.subr.bf16.mxu0 0
    %765 = vmatpush1.bf16.msra.mxu0 0
    %766 = vmatprep.subr.bf16.mxu0 0
    %767 = vmatpush1.bf16.msra.mxu0 0
    %768 = vmatprep.subr.bf16.mxu0 0
    %769 = vmatpush1.bf16.msra.mxu0 0
    %770 = vmatprep.subr.bf16.mxu0 0
    %771 = vmatpush1.bf16.msra.mxu0 0
    %772 = vmatprep.subr.bf16.mxu0 0
    %773 = vmatpush1.bf16.msra.mxu0 0
    %774 = vmatprep.subr.bf16.mxu0 0
    %775 = vmatpush1.bf16.msra.mxu0 0
    %776 = vmatprep.mubr.bf16.mxu0 0
    %777 = vmatmul.mubr.bf16.gmra.mrb[0].mxu0 %v650
    %v778 = vpop.f32.mrb[0].mxu0
    %v779 = vadd.f32 0.0, %v778
    %v780 = vpop.f32.mrb[0].mxu0
    %v781 = vpop.f32.mrb[0].mxu0
    %v782 = vpop.f32.mrb[0].mxu0
    %783 = vdwg.mxu0
    %s784 = scalar_lea.vmem [#allocation3], 8
    %785 = vst.msk [vmem:[%s784] sm:$0xff] %vm191, %v779
    // Predicated region
    $region46: #{tpu_custom_call.1} parent=1 // pred_check
      _
    $region47: #{tpu_custom_call.1} parent=1 // pred_check_branch
      %787 = sbr.rel (0) target = $region49
    $region48: #{tpu_custom_call.1} parent=1 // pred_region
      %s789 = ssub.s32 256, 256
      %790 = vsyncadd [#allocation4], %s789
      %s791 = sshll.u32 [#allocation3], 4
      %s792 = int_to_ptr.vmem [resolvable:$true] %s791
      %797 = dma.vmem_to_hbm [thread:$0]  %s792, 256, %s11, [#allocation4], 128, 128, 8
    $region49: #{tpu_custom_call.1} parent=1 // pred_fallthru
      _
    // Predicated region
    $region50: #{tpu_custom_call.1} parent=1 // pred_check
      _
    $region51: #{tpu_custom_call.1} parent=1 // pred_check_branch
      %799 = sbr.rel (0) target = $region53
    $region52: #{tpu_custom_call.1} parent=1 // pred_region
      %800 = dma.done [#allocation4], 256
    $region53: #{tpu_custom_call.1} parent=1 // pred_fallthru
      _
    %801 = vsyncpa [#allocation4], 1

</llo_original>
